<compile_context>
chip_gen: v6e
topology: v6e:2x2x1
jax: 0.10.0
libtpu: 0.0.40
codegen_flags: <defaults>
</compile_context>

<pallas_src>
import math

import jax
import jax.numpy as jnp
from jax import lax
from jax.experimental import pallas as pl
from jax.experimental.pallas import tpu as pltpu

n_embd = 384
head_size = 32


def head_kernel(x_ref, w_ref, o_ref, qkv_ref):
    # x_ref   : (T, C)   full sequence row of x (bf16)
    # w_ref   : (C, 3H)  fused [Wq*scale | Wk | Wv] (bf16)
    # o_ref   : (tq, H)  output tile (f32)
    # qkv_ref : (T, 3H)  bf16 VMEM scratch, persists across the qi axis
    qi = pl.program_id(1)
    tq, H = o_ref.shape
    T = x_ref.shape[0]

    # Fused QKV projection, computed once per batch row and cached in VMEM.
    @pl.when(qi == 0)
    def _():
        qkv = jnp.dot(x_ref[...], w_ref[...],
                      preferred_element_type=jnp.float32)          # (T, 3H) f32
        qkv_ref[...] = qkv.astype(qkv_ref.dtype)

    start = pl.multiple_of(qi * tq, tq)
    q = qkv_ref[pl.ds(start, tq), :H]          # (tq, H) bf16 (scale pre-folded)
    k = qkv_ref[:, H:2 * H]                    # (T,  H) bf16
    v = qkv_ref[:, 2 * H:]                     # (T,  H) bf16

    # Scores: q @ k^T, bf16 in / f32 accumulate.
    s = lax.dot_general(
        q, k,
        dimension_numbers=(((1,), (1,)), ((), ())),
        preferred_element_type=jnp.float32,
    )                                                               # (tq, T)

    # Causal mask: global query row = qi * tq + r ; keep col <= row.
    row = lax.broadcasted_iota(jnp.int32, (tq, 1), 0) + qi * tq
    col = lax.broadcasted_iota(jnp.int32, (1, T), 1)
    s = jnp.where(col <= row, s, -jnp.inf)

    # Numerically-stable softmax along the key axis (f32; recip on the EUP).
    m = jnp.max(s, axis=-1, keepdims=True)
    p = jnp.exp(s - m)
    denom = jnp.sum(p, axis=-1, keepdims=True)
    p = p * pl.reciprocal(denom, approx=True)

    # Dropout: identity (eval mode).

    out = jnp.dot(p.astype(jnp.bfloat16), v,
                  preferred_element_type=jnp.float32)               # (tq, H)
    o_ref[...] = out.astype(o_ref.dtype)


def _pick_tq(T):
    if T <= 512:
        return T
    for cand in (512, 384, 256, 128):
        if T % cand == 0:
            return cand
    return T  # fall back to a single tile


def head_forward(x, w_qkv, *, tq=None):
    """x: (B, T, C) float32.
    w_qkv: (C, 3H) = [Wq * H**-0.5 | Wk | Wv] concatenated along the output dim
    (already transposed relative to torch's nn.Linear weight, scale folded into Wq)."""
    B, T, C = x.shape
    H = w_qkv.shape[1] // 3
    if tq is None:
        tq = _pick_tq(T)
    assert T % tq == 0, "query tile must divide T"
    nq = T // tq

    # Pre-cast the dominant HBM traffic to bf16; accumulation stays f32 in-kernel.
    x_bf = x.astype(jnp.bfloat16)
    w_bf = w_qkv.astype(jnp.bfloat16)

    # Rough per-core VMEM footprint (bytes): double-buffered bf16 x block,
    # resident weights, bf16 qkv scratch, f32 score tile + working set, output.
    vmem_est = (2 * T * C * 2) + (2 * C * 3 * H * 2) + (T * 3 * H * 2) \
               + (4 * tq * T * 4) + (2 * tq * H * 4)
    compiler_kwargs = dict(dimension_semantics=("parallel", "arbitrary"))
    if vmem_est > (32 << 20):
        compiler_kwargs["vmem_limit_bytes"] = int(min(2 * vmem_est, 96 << 20))

    cost = pl.CostEstimate(
        flops=int(B * (2 * T * C * 3 * H) + B * (4 * T * T * H)),
        transcendentals=int(B * T * T),
        bytes_accessed=int(B * T * C * 2 + C * 3 * H * 2 + B * T * H * 4),
    )

    return pl.pallas_call(
        head_kernel,
        out_shape=jax.ShapeDtypeStruct((B, T, H), x.dtype),
        grid_spec=pltpu.PrefetchScalarGridSpec(
            num_scalar_prefetch=0,
            grid=(B, nq),
            in_specs=[
                # full sequence of x; same block across qi -> fetched once per b
                pl.BlockSpec((pl.Squeezed(), T, C), lambda b, qi: (b, 0, 0)),
                # fused weights, resident across the whole grid
                pl.BlockSpec((C, 3 * H), lambda b, qi: (0, 0)),
            ],
            out_specs=pl.BlockSpec((pl.Squeezed(), tq, H),
                                   lambda b, qi: (b, qi, 0)),
            scratch_shapes=[pltpu.VMEM((T, 3 * H), jnp.bfloat16)],
        ),
        compiler_params=pltpu.CompilerParams(**compiler_kwargs),
        cost_estimate=cost,
    )(x_bf, w_bf)


def head_reference(x, wk, wq, wv):
    """Pure-JAX float32 reference (matches the PyTorch module in eval mode)."""
    k = x @ wk
    q = x @ wq
    v = x @ wv
    wei = (q @ jnp.swapaxes(k, -1, -2)) * (head_size ** -0.5)
    T = x.shape[1]
    tril = jnp.tril(jnp.ones((T, T), dtype=bool))
    wei = jnp.where(tril, wei, -jnp.inf)
    wei = jax.nn.softmax(wei, axis=-1)
    return wei @ v


def _make_weights(key):
    kk, kq, kv = jax.random.split(key, 3)
    bound = 1.0 / (n_embd ** 0.5)
    wk = jax.random.uniform(kk, (n_embd, head_size), jnp.float32, -bound, bound)
    wq = jax.random.uniform(kq, (n_embd, head_size), jnp.float32, -bound, bound)
    wv = jax.random.uniform(kv, (n_embd, head_size), jnp.float32, -bound, bound)
    # Fused weight, order must match kernel slicing: [Wq*scale | Wk | Wv].
    scale = 1.0 / math.sqrt(head_size)
    w_qkv = jnp.concatenate([wq * scale, wk, wv], axis=1)  # (C, 3H)
    return wk, wq, wv, w_qkv


if __name__ == "__main__":
    key = jax.random.PRNGKey(0)
    kx, kw, kx2 = jax.random.split(key, 3)
    wk, wq, wv, w_qkv = _make_weights(kw)

    # Small primary check (B=2, T=8).
    B, T = 2, 8
    x = jax.random.normal(kx, (B, T, n_embd), dtype=jnp.float32)
    out = jax.block_until_ready(head_forward(x, w_qkv))
    ref = head_reference(x, wk, wq, wv)
    assert out.shape == (B, T, head_size)
    # bf16 MXU operands + approx reciprocal -> small numerical difference vs f32.
    assert jnp.allclose(out, ref, atol=3e-2, rtol=3e-2), float(
        jnp.max(jnp.abs(out - ref)))

    # Secondary check exercising the cached-QKV multi-tile path (nq > 1).
    B2, T2 = 1, 256
    x2 = jax.random.normal(kx2, (B2, T2, n_embd), dtype=jnp.float32)
    out2 = jax.block_until_ready(head_forward(x2, w_qkv, tq=128))
    ref2 = head_reference(x2, wk, wq, wv)
    assert jnp.allclose(out2, ref2, atol=3e-2, rtol=3e-2), float(
        jnp.max(jnp.abs(out2 - ref2)))

    print("KERNEL_OK")
</pallas_src>

<mosaic_0001>
module attributes {stable_mosaic.version = 11 : i64} {
  func.func @head_kernel(%arg0: i32, %arg1: i32, %arg2: memref<1x8x384xbf16, #tpu.memory_space<vmem>>, %arg3: memref<384x96xbf16, #tpu.memory_space<vmem>>, %arg4: memref<1x8x32xf32, #tpu.memory_space<vmem>>, %arg5: memref<8x96xbf16, #tpu.memory_space<vmem>>) attributes {dimension_semantics = [#tpu.dimension_semantics<parallel>, #tpu.dimension_semantics<arbitrary>], iteration_bounds = array<i64: 2, 1>, scalar_prefetch = 0 : i64, scratch_operands = 1 : i64, tpu.core_type = #tpu.core_type<tc>, window_params = [{transform_indices = @transform_0, window_bounds = array<i64: 1, 8, 384>}, {pipeline_mode = #tpu.pipeline_mode<synchronous>, transform_indices = @transform_1, window_bounds = array<i64: 384, 96>}, {transform_indices = @transform_2, window_bounds = array<i64: 1, 8, 32>}]} {
    %c0_i32 = arith.constant 0 : i32
    %0 = arith.cmpi eq, %arg1, %c0_i32 : i32
    %1 = arith.extui %0 : i1 to i32
    %c0_i32_0 = arith.constant 0 : i32
    %2 = arith.cmpi ne, %1, %c0_i32_0 : i32
    scf.if %2 {
      %c0_11 = arith.constant 0 : index
      %c0_12 = arith.constant 0 : index
      %c0_13 = arith.constant 0 : index
      %35 = vector.load %arg2[%c0_11, %c0_12, %c0_13] : memref<1x8x384xbf16, #tpu.memory_space<vmem>>, vector<1x8x384xbf16>
      %36 = vector.shape_cast %35 : vector<1x8x384xbf16> to vector<8x384xbf16>
      %c0_14 = arith.constant 0 : index
      %c0_15 = arith.constant 0 : index
      %37 = vector.load %arg3[%c0_14, %c0_15] : memref<384x96xbf16, #tpu.memory_space<vmem>>, vector<384x96xbf16>
      %cst_16 = arith.constant dense<0.000000e+00> : vector<8x96xf32>
      %38 = tpu.matmul %36, %37, %cst_16 {dimension_numbers = #tpu.dot_dimension_numbers<[1], [0], [0], [1], [0, 0, 1, 1], [], []>} : vector<8x384xbf16>, vector<384x96xbf16>, vector<8x96xf32> -> vector<8x96xf32>
      %39 = arith.truncf %38 : vector<8x96xf32> to vector<8x96xbf16>
      %c0_17 = arith.constant 0 : index
      %c0_18 = arith.constant 0 : index
      %40 = vector.load %arg5[%c0_17, %c0_18] : memref<8x96xbf16, #tpu.memory_space<vmem>>, vector<8x96xbf16>
      tpu.vector_store %arg5[%c0_17, %c0_18], %39 {strides = array<i32>} : memref<8x96xbf16, #tpu.memory_space<vmem>>, vector<8x96xbf16>,
    } else {
    }
    %c8_i32 = arith.constant 8 : i32
    %3 = arith.muli %arg1, %c8_i32 : i32
    %4 = tpu.assume_multiple %3, 8 : i32
    %5 = arith.index_cast %4 : i32 to index
    %c0 = arith.constant 0 : index
    %6 = vector.load %arg5[%5, %c0] : memref<8x96xbf16, #tpu.memory_space<vmem>>, vector<8x32xbf16>
    %c0_1 = arith.constant 0 : index
    %c32 = arith.constant 32 : index
    %7 = vector.load %arg5[%c0_1, %c32] : memref<8x96xbf16, #tpu.memory_space<vmem>>, vector<8x32xbf16>
    %c0_2 = arith.constant 0 : index
    %c64 = arith.constant 64 : index
    %8 = vector.load %arg5[%c0_2, %c64] : memref<8x96xbf16, #tpu.memory_space<vmem>>, vector<8x32xbf16>
    %cst = arith.constant dense<0.000000e+00> : vector<8x8xf32>
    %9 = tpu.matmul %6, %7, %cst {dimension_numbers = #tpu.dot_dimension_numbers<[1], [1], [0], [0], [0, 0, 1, 0], [], []>} : vector<8x32xbf16>, vector<8x32xbf16>, vector<8x8xf32> -> vector<8x8xf32>
    %10 = tpu.iota {dimensions = array<i32: 0>} : vector<8x1xi32>
    %c8_i32_3 = arith.constant 8 : i32
    %11 = arith.muli %arg1, %c8_i32_3 : i32
    %12 = vector.broadcast %11 : i32 to vector<8x1xi32>
    %13 = arith.addi %10, %12 : vector<8x1xi32>
    %14 = tpu.iota {dimensions = array<i32: 1>} : vector<1x8xi32>
    %15 = vector.broadcast %14 : vector<1x8xi32> to vector<8x8xi32>
    %16 = vector.broadcast %13 : vector<8x1xi32> to vector<8x8xi32>
    %17 = arith.cmpi sle, %15, %16 : vector<8x8xi32>
    %cst_4 = arith.constant 0xFF800000 : f32
    %18 = vector.broadcast %cst_4 : f32 to vector<8x8xf32>
    %19 = arith.select %17, %9, %18 : vector<8x8xi1>, vector<8x8xf32>
    %cst_5 = arith.constant dense<0xFF800000> : vector<8xf32>
    %20 = vector.multi_reduction <maximumf>, %19, %cst_5 [1] : vector<8x8xf32> to vector<8xf32>
    %21 = vector.shape_cast %20 : vector<8xf32> to vector<8x1xf32>
    %22 = vector.broadcast %21 : vector<8x1xf32> to vector<8x8xf32>
    %23 = arith.subf %19, %22 : vector<8x8xf32>
    %24 = math.exp %23 : vector<8x8xf32>
    %cst_6 = arith.constant dense<0.000000e+00> : vector<8xf32>
    %25 = vector.multi_reduction <add>, %24, %cst_6 [1] : vector<8x8xf32> to vector<8xf32>
    %26 = vector.shape_cast %25 : vector<8xf32> to vector<8x1xf32>
    %27 = tpu.reciprocal %26 {approx = true} : vector<8x1xf32> -> vector<8x1xf32>
    %28 = vector.broadcast %27 : vector<8x1xf32> to vector<8x8xf32>
    %29 = arith.mulf %24, %28 : vector<8x8xf32>
    %30 = arith.truncf %29 : vector<8x8xf32> to vector<8x8xbf16>
    %cst_7 = arith.constant dense<0.000000e+00> : vector<8x32xf32>
    %31 = tpu.matmul %30, %8, %cst_7 {dimension_numbers = #tpu.dot_dimension_numbers<[1], [0], [0], [1], [0, 0, 1, 1], [], []>} : vector<8x8xbf16>, vector<8x32xbf16>, vector<8x32xf32> -> vector<8x32xf32>
    %c0_8 = arith.constant 0 : index
    %c0_9 = arith.constant 0 : index
    %c0_10 = arith.constant 0 : index
    %32 = vector.load %arg4[%c0_8, %c0_9, %c0_10] : memref<1x8x32xf32, #tpu.memory_space<vmem>>, vector<1x8x32xf32>
    %33 = vector.shape_cast %32 : vector<1x8x32xf32> to vector<8x32xf32>
    %34 = vector.shape_cast %31 : vector<8x32xf32> to vector<1x8x32xf32>
    tpu.vector_store %arg4[%c0_8, %c0_9, %c0_10], %34 {strides = array<i32>} : memref<1x8x32xf32, #tpu.memory_space<vmem>>, vector<1x8x32xf32>,
    return
  }
  func.func @transform_0(%arg0: i32, %arg1: i32) -> (i32, i32, i32) {
    %c0_i32 = arith.constant 0 : i32
    %c0_i32_0 = arith.constant 0 : i32
    %c0_i32_1 = arith.constant 0 : i32
    return %arg0, %c0_i32, %c0_i32_0 : i32, i32, i32
  }
  func.func @transform_1(%arg0: i32, %arg1: i32) -> (i32, i32) {
    %c0_i32 = arith.constant 0 : i32
    %c0_i32_0 = arith.constant 0 : i32
    %c0_i32_1 = arith.constant 0 : i32
    return %c0_i32, %c0_i32_0 : i32, i32
  }
  func.func @transform_2(%arg0: i32, %arg1: i32) -> (i32, i32, i32) {
    %c0_i32 = arith.constant 0 : i32
    %c0_i32_0 = arith.constant 0 : i32
    return %arg0, %arg1, %c0_i32 : i32, i32, i32
  }
}

</mosaic_0001>

<llo_original>
// kernel: tpu_custom_call.1
$region0: #{tpu_custom_call.1}
  #allocation0 [shape = 'u32[]', space=smem, size = 0x4, offset = 0x4, fixed_abs, tag = 'smem constant byte address 0x4 - core index']
  #allocation1 [shape = 'u32[144,128]{1,0:T(1,128)}', space=vmem, size = 0x12000, scoped, tag = 'internal scratch']
  #allocation2 [shape = 'bf16[8,96]{1,0:T(8,128)(2,1)}', space=vmem, size = 0x800, scoped, tag = 'scratch operand']
  %s0 = inlined_call_operand.vmem [shape: bf16[2,8,384], index: 0, kind: input, shape index: {}]
  %s1 = inlined_call_operand.vmem [shape: bf16[384,96], index: 1, kind: input, shape index: {}]
  %s2 = inlined_call_operand.hbm [shape: f32[2,8,32], index: 2, kind: output, shape index: {}]
  %s3 = sld [smem:[#allocation0]]
  $region45: #{tpu_custom_call.1} parent=0
    _
  %s5 = ssub.s32 1, %s3
  %s6 = scalar_select 0, %s5, %s3
  $region1: #{tpu_custom_call.1} parent=0
    #allocation3 [shape = 'u8[8192]{0}', space=vmem, size = 0x2000, scoped, tag = 'output window, operand 0']
    #allocation4 [shape = 's32[2]{0}', space=sflag, size = 0x8, scoped, tag = 'scoped memory for tpu_custom_call.1']
    %7 = vsyncpa [#allocation4], 0
    %s8 = scalar_lea.sflag [#allocation4], 1
    %9 = vsyncpa %s8, 0
    loop: start=0, step=1, limit=4
    $region2: #{tpu_custom_call.1} parent=1 // loop_pre_header
      _
    $region3: #{tpu_custom_call.1} parent=1 // loop_header
      %s11 = sphi 0, %s15
      %p12 = scmp.ge.s32.totalorder %s11, 4
      %s18 = sphi 0, %s30
      %s19 = sphi 0, %s26
      %s20 = sphi 0, %s18
      %s21 = sphi 0, %s19
      %s22 = sphi 0, %s20
      %s23 = sphi 0, %s21
      %s33 = sphi 0, %s35
      %s36 = sphi 0, %s33
      %s37 = sphi 0, %s36
      %s53 = sphi 0, %s37
      %s57 = sphi 0, %s57
      %s59 = sphi 0, %s57
      %s60 = sphi 0, %s59
      %s74 = sphi 0, %s60
      %s82 = sphi 0, %s84
      %s85 = sphi 0, %s82
      %s86 = sphi 0, %s85
      %s102 = sphi 0, %s86
    $region4: #{tpu_custom_call.1} parent=1 // loop_header_branch
      %14 = sbr.rel (%p12) target = $region8
    $region5: #{tpu_custom_call.1} parent=1 // loop_body
      %s16 = ssub.s32 %s11, 1
      %s17 = ssub.s32 %s11, 2
      %s24 = sadd.s32 1, %s19
      %p25 = scmp.ge.s32.totalorder %s24, 1
      %s26 = scalar_select %p25, 0, %s24
      %s27 = sadd.s32 1, %s18
      %s28 = scalar_select %p25, %s27, %s18
      %p29 = scmp.ge.s32.totalorder %s28, 2
      %s30 = scalar_select %p29, 0, %s28
      %s31 = ssub.s32 %s18, %s30
      %p32 = scmp.eq.s32.totalorder %s31, 0
      %s34 = sadd.s32 %s33, 1
      %s35 = scalar_select %p32, %s33, %s34
      %p38 = pneg %p32
      %p39 = scmp.eq.s32.totalorder %s11, 1
      %p40 = por %p38, %p39
      %p41 = scmp.ne.s32.totalorder %s33, %s36
      %p42 = scmp.eq.s32.totalorder %s11, 0
      %p43 = por %p41, %p42
      %p44 = scmp.ne.s32.totalorder %s33, %s36
      %p45 = scmp.eq.s32.totalorder %s16, 1
      %p46 = por %p44, %p45
      %p47 = scmp.ne.s32.totalorder %s36, %s37
      %p48 = scmp.eq.s32.totalorder %s16, 0
      %p49 = por %p47, %p48
      %p50 = scmp.ne.s32.totalorder %s36, %s37
      %p51 = scmp.eq.s32.totalorder %s17, 1
      %p52 = por %p50, %p51
      %p54 = scmp.ne.s32.totalorder %s37, %s53
      %p55 = scmp.eq.s32.totalorder %s17, 0
      %p56 = por %p54, %p55
      %s58 = sadd.s32 %s57, 1
      %p61 = scmp.eq.s32.totalorder %s11, 1
      %p62 = scmp.ne.s32.totalorder %s57, %s59
      %p63 = scmp.eq.s32.totalorder %s11, 0
      %p64 = por %p62, %p63
      %p65 = scmp.ne.s32.totalorder %s57, %s59
      %p66 = scmp.eq.s32.totalorder %s16, 1
      %p67 = por %p65, %p66
      %p68 = scmp.ne.s32.totalorder %s59, %s60
      %p69 = scmp.eq.s32.totalorder %s16, 0
      %p70 = por %p68, %p69
      %p71 = scmp.ne.s32.totalorder %s59, %s60
      %p72 = scmp.eq.s32.totalorder %s17, 1
      %p73 = por %p71, %p72
      %p75 = scmp.ne.s32.totalorder %s60, %s74
      %p76 = scmp.eq.s32.totalorder %s17, 0
      %p77 = por %p75, %p76
      %s78 = ssub.s32 %s18, %s30
      %s79 = ssub.s32 %s19, %s26
      %s80 = sor.u32 %s78, %s79
      %p81 = scmp.eq.s32.totalorder %s80, 0
      %s83 = sadd.s32 %s82, 1
      %s84 = scalar_select %p81, %s82, %s83
      %p87 = pneg %p81
      %p88 = scmp.eq.s32.totalorder %s11, 1
      %p89 = por %p87, %p88
      %p90 = scmp.ne.s32.totalorder %s82, %s85
      %p91 = scmp.eq.s32.totalorder %s11, 0
      %p92 = por %p90, %p91
      %p93 = scmp.ne.s32.totalorder %s82, %s85
      %p94 = scmp.eq.s32.totalorder %s16, 1
      %p95 = por %p93, %p94
      %p96 = scmp.ne.s32.totalorder %s85, %s86
      %p97 = scmp.eq.s32.totalorder %s16, 0
      %p98 = por %p96, %p97
      %p99 = scmp.ne.s32.totalorder %s85, %s86
      %p100 = scmp.eq.s32.totalorder %s17, 1
      %p101 = por %p99, %p100
      %p103 = scmp.ne.s32.totalorder %s86, %s102
      %p104 = scmp.eq.s32.totalorder %s17, 0
      %p105 = por %p103, %p104
      %p106 = scmp.le.s32.totalorder 1, %s11
      %p107 = scmp.lt.s32.totalorder %s11, 3
      %p108 = pnand %p106, %p107
      %p109 = pneg %p108
      // Predicated region
      $region9: #{tpu_custom_call.1} parent=5 // pred_check
        _
      $region10: #{tpu_custom_call.1} parent=5 // pred_check_branch
        %111 = sbr.rel (%p108) target = $region12
      $region11: #{tpu_custom_call.1} parent=5 // pred_region
        %s112 = ssub.s32 %s11, 1
        // Predicated region
        $region13: #{tpu_custom_call.1} parent=11 // pred_check
          %p113 = pneg %p70
        $region14: #{tpu_custom_call.1} parent=11 // pred_check_branch
          %115 = sbr.rel (%p113) target = $region16
        $region15: #{tpu_custom_call.1} parent=11 // pred_region
          _
        $region16: #{tpu_custom_call.1} parent=11 // pred_fallthru
          _
      $region12: #{tpu_custom_call.1} parent=5 // pred_fallthru
        _
      %p116 = scmp.lt.s32.totalorder %s11, 2
      // Predicated region
      $region17: #{tpu_custom_call.1} parent=5 // pred_check
        %p117 = pneg %p116
      $region18: #{tpu_custom_call.1} parent=5 // pred_check_branch
        %119 = sbr.rel (%p117) target = $region20
      $region19: #{tpu_custom_call.1} parent=5 // pred_region
        // Predicated region
        $region21: #{tpu_custom_call.1} parent=19 // pred_check
          %p120 = pneg %p43
        $region22: #{tpu_custom_call.1} parent=19 // pred_check_branch
          %122 = sbr.rel (%p120) target = $region24
        $region23: #{tpu_custom_call.1} parent=19 // pred_region
          %p123 = scmp.lt.s32.totalorder %s18, 1
          %s124 = scalar_select %p123, %s18, 1
          %s125 = smul.addr %s124, 3
          %s126 = smul.addr %s125, 4
          %s127 = scalar_lea.vmem %s0, %s126
        $region24: #{tpu_custom_call.1} parent=19 // pred_fallthru
          _
      $region20: #{tpu_custom_call.1} parent=5 // pred_fallthru
        _
      %p128 = scmp.le.s32.totalorder 1, %s11
      %p129 = scmp.lt.s32.totalorder %s11, 3
      %p130 = pnand %p128, %p129
      %p131 = pneg %p130
      // Predicated region
      $region25: #{tpu_custom_call.1} parent=5 // pred_check
        _
      $region26: #{tpu_custom_call.1} parent=5 // pred_check_branch
        %133 = sbr.rel (%p130) target = $region28
      $region27: #{tpu_custom_call.1} parent=5 // pred_region
        %s134 = ssub.s32 %s11, 1
        %p135 = scmp.lt.s32.totalorder %s20, 1
        %s136 = scalar_select %p135, %s20, 1
        %s137 = smul.addr %s136, 3
        %s138 = smul.addr %s137, 4
        %s139 = scalar_lea.vmem %s0, %s138
        %p140 = pneg %p49
        %p141 = pneg %p46
        %p142 = pneg %p70
        %p143 = pneg %p67
        %p144 = pneg %p98
        %p145 = pneg %p95
        %s146 = sand.u32 %s85, 1
        %s147 = scalar_lea.sflag [#allocation4], %s146
        %s148 = sand.u32 %s85, 1
        %s149 = smul.addr %s148, 8
        %s150 = scalar_lea.vmem [#allocation3], %s149
        %p151 = scmp.lt.s32.totalorder %s20, 1
        %s152 = scalar_select %p151, %s20, 1
        %s153 = smul.addr %s152, 3
        %s154 = smul.addr %s153, 4
        %s155 = scalar_lea.vmem %s0, %s154
        %p157 = scmp.eq.s32.totalorder %s21, 0
        // Predicated region
        $region29: #{tpu_custom_call.1} parent=27 // pred_check
          %p158 = pneg %p157
        $region30: #{tpu_custom_call.1} parent=27 // pred_check_branch
          %160 = sbr.rel (%p158) target = $region32
        $region31: #{tpu_custom_call.1} parent=27 // pred_region
          %v161 = vld [vmem:[%s155] sm:$0xff]
          %v162 = vld [vmem:[%s155 + $0x8] sm:$0xf]
          %v163 = vld [vmem:[%s1] sm:$0xf]
          %v164 = vld [vmem:[%s1 + $0x4] sm:$0xf]
          %v165 = vld [vmem:[%s1 + $0x8] sm:$0xf]
          %v166 = vld [vmem:[%s1 + $0xc] sm:$0xf]
          %v167 = vld [vmem:[%s1 + $0x10] sm:$0xf]
          %v168 = vld [vmem:[%s1 + $0x14] sm:$0xf]
          %v169 = vld [vmem:[%s1 + $0x18] sm:$0xf]
          %v170 = vld [vmem:[%s1 + $0x1c] sm:$0xf]
          %v171 = vld [vmem:[%s1 + $0x20] sm:$0xf]
          %v172 = vld [vmem:[%s1 + $0x24] sm:$0xf]
          %v173 = vld [vmem:[%s1 + $0x28] sm:$0xf]
          %v174 = vld [vmem:[%s1 + $0x2c] sm:$0xf]
          %v175 = vld [vmem:[%s1 + $0x30] sm:$0xf]
          %v176 = vld [vmem:[%s1 + $0x34] sm:$0xf]
          %v177 = vld [vmem:[%s1 + $0x38] sm:$0xf]
          %v178 = vld [vmem:[%s1 + $0x3c] sm:$0xf]
          %v179 = vld [vmem:[%s1 + $0x40] sm:$0xf]
          %v180 = vld [vmem:[%s1 + $0x44] sm:$0xf]
          %v181 = vld [vmem:[%s1 + $0x48] sm:$0xf]
          %v182 = vld [vmem:[%s1 + $0x4c] sm:$0xf]
          %v183 = vld [vmem:[%s1 + $0x50] sm:$0xf]
          %v184 = vld [vmem:[%s1 + $0x54] sm:$0xf]
          %v185 = vld [vmem:[%s1 + $0x58] sm:$0xf]
          %v186 = vld [vmem:[%s1 + $0x5c] sm:$0xf]
          %v187 = vld [vmem:[%s1 + $0x60] sm:$0xf]
          %v188 = vld [vmem:[%s1 + $0x64] sm:$0xf]
          %v189 = vld [vmem:[%s1 + $0x68] sm:$0xf]
          %v190 = vld [vmem:[%s1 + $0x6c] sm:$0xf]
          %v191 = vld [vmem:[%s1 + $0x70] sm:$0xf]
          %v192 = vld [vmem:[%s1 + $0x74] sm:$0xf]
          %v193 = vld [vmem:[%s1 + $0x78] sm:$0xf]
          %v194 = vld [vmem:[%s1 + $0x7c] sm:$0xf]
          %v195 = vld [vmem:[%s1 + $0x80] sm:$0xf]
          %v196 = vld [vmem:[%s1 + $0x84] sm:$0xf]
          %v197 = vld [vmem:[%s1 + $0x88] sm:$0xf]
          %v198 = vld [vmem:[%s1 + $0x8c] sm:$0xf]
          %v199 = vld [vmem:[%s1 + $0x90] sm:$0xf]
          %v200 = vld [vmem:[%s1 + $0x94] sm:$0xf]
          %v201 = vld [vmem:[%s1 + $0x98] sm:$0xf]
          %v202 = vld [vmem:[%s1 + $0x9c] sm:$0xf]
          %v203 = vld [vmem:[%s1 + $0xa0] sm:$0xf]
          %v204 = vld [vmem:[%s1 + $0xa4] sm:$0xf]
          %v205 = vld [vmem:[%s1 + $0xa8] sm:$0xf]
          %v206 = vld [vmem:[%s1 + $0xac] sm:$0xf]
          %v207 = vld [vmem:[%s1 + $0xb0] sm:$0xf]
          %v208 = vld [vmem:[%s1 + $0xb4] sm:$0xf]
          %v209 = vld [vmem:[%s1 + $0xb8] sm:$0xf]
          %v210 = vld [vmem:[%s1 + $0xbc] sm:$0xf]
          %v213 = vunpack.c.l.b16 %v161
          %v214 = vunpack.c.h.b16 %v161
          %v215 = vunpack.c.l.b16 %v162
          %v216 = vpack.c.b16 %v213, %v213
          %v217 = vpack.c.b16 %v214, %v214
          %v218 = vpack.c.b16 %v215, %v215
          %v270 = vunpack.c.l.b16 %v163
          %v271 = vunpack.c.l.b16 %v164
          %v272 = vunpack.c.l.b16 %v165
          %v273 = vunpack.c.l.b16 %v166
          %v274 = vunpack.c.l.b16 %v167
          %v275 = vunpack.c.l.b16 %v168
          %v276 = vunpack.c.l.b16 %v169
          %v277 = vunpack.c.l.b16 %v170
          %v278 = vunpack.c.l.b16 %v171
          %v279 = vunpack.c.l.b16 %v172
          %v280 = vunpack.c.l.b16 %v173
          %v281 = vunpack.c.l.b16 %v174
          %v282 = vunpack.c.l.b16 %v175
          %v283 = vunpack.c.l.b16 %v176
          %v284 = vunpack.c.l.b16 %v177
          %v285 = vunpack.c.l.b16 %v178
          %v286 = vunpack.c.l.b16 %v179
          %v287 = vunpack.c.l.b16 %v180
          %v288 = vunpack.c.l.b16 %v181
          %v289 = vunpack.c.l.b16 %v182
          %v290 = vunpack.c.l.b16 %v183
          %v291 = vunpack.c.l.b16 %v184
          %v292 = vunpack.c.l.b16 %v185
          %v293 = vunpack.c.l.b16 %v186
          %v294 = vunpack.c.l.b16 %v187
          %v295 = vunpack.c.l.b16 %v188
          %v296 = vunpack.c.l.b16 %v189
          %v297 = vunpack.c.l.b16 %v190
          %v298 = vunpack.c.l.b16 %v191
          %v299 = vunpack.c.l.b16 %v192
          %v300 = vunpack.c.l.b16 %v193
          %v301 = vunpack.c.l.b16 %v194
          %v302 = vunpack.c.l.b16 %v195
          %v303 = vunpack.c.l.b16 %v196
          %v304 = vunpack.c.l.b16 %v197
          %v305 = vunpack.c.l.b16 %v198
          %v306 = vunpack.c.l.b16 %v199
          %v307 = vunpack.c.l.b16 %v200
          %v308 = vunpack.c.l.b16 %v201
          %v309 = vunpack.c.l.b16 %v202
          %v310 = vunpack.c.l.b16 %v203
          %v311 = vunpack.c.l.b16 %v204
          %v312 = vunpack.c.l.b16 %v205
          %v313 = vunpack.c.l.b16 %v206
          %v314 = vunpack.c.l.b16 %v207
          %v315 = vunpack.c.l.b16 %v208
          %v316 = vunpack.c.l.b16 %v209
          %v317 = vunpack.c.l.b16 %v210
          %v318 = vpack.c.b16 %v271, %v270
          %v319 = vpack.c.b16 %v273, %v272
          %v320 = vpack.c.b16 %v275, %v274
          %v321 = vpack.c.b16 %v277, %v276
          %v322 = vpack.c.b16 %v279, %v278
          %v323 = vpack.c.b16 %v281, %v280
          %v324 = vpack.c.b16 %v283, %v282
          %v325 = vpack.c.b16 %v285, %v284
          %v326 = vpack.c.b16 %v287, %v286
          %v327 = vpack.c.b16 %v289, %v288
          %v328 = vpack.c.b16 %v291, %v290
          %v329 = vpack.c.b16 %v293, %v292
          %v330 = vpack.c.b16 %v295, %v294
          %v331 = vpack.c.b16 %v297, %v296
          %v332 = vpack.c.b16 %v299, %v298
          %v333 = vpack.c.b16 %v301, %v300
          %v334 = vpack.c.b16 %v303, %v302
          %v335 = vpack.c.b16 %v305, %v304
          %v336 = vpack.c.b16 %v307, %v306
          %v337 = vpack.c.b16 %v309, %v308
          %v338 = vpack.c.b16 %v311, %v310
          %v339 = vpack.c.b16 %v313, %v312
          %v340 = vpack.c.b16 %v315, %v314
          %v341 = vpack.c.b16 %v317, %v316
          %366 = vmatprep.subr.bf16.mxu0 0
          %367 = vmatpush1.bf16.msra.mxu0 %v325
          %368 = vmatprep.subr.bf16.mxu0 0
          %369 = vmatpush1.bf16.msra.mxu0 %v324
          %370 = vmatprep.subr.bf16.mxu0 0
          %371 = vmatpush1.bf16.msra.mxu0 %v323
          %372 = vmatprep.subr.bf16.mxu0 0
          %373 = vmatpush1.bf16.msra.mxu0 %v322
          %374 = vmatprep.subr.bf16.mxu0 0
          %375 = vmatpush1.bf16.msra.mxu0 %v321
          %376 = vmatprep.subr.bf16.mxu0 0
          %377 = vmatpush1.bf16.msra.mxu0 %v320
          %378 = vmatprep.subr.bf16.mxu0 0
          %379 = vmatpush1.bf16.msra.mxu0 %v319
          %380 = vmatprep.subr.bf16.mxu0 0
          %381 = vmatpush1.bf16.msra.mxu0 %v318
          %382 = vmatprep.subr.bf16.mxu0 0
          %383 = vmatpush2.bf16.msra.mxu0 %v333
          %384 = vmatprep.subr.bf16.mxu0 0
          %385 = vmatpush2.bf16.msra.mxu0 %v332
          %386 = vmatprep.subr.bf16.mxu0 0
          %387 = vmatpush2.bf16.msra.mxu0 %v331
          %388 = vmatprep.subr.bf16.mxu0 0
          %389 = vmatpush2.bf16.msra.mxu0 %v330
          %390 = vmatprep.subr.bf16.mxu0 0
          %391 = vmatpush2.bf16.msra.mxu0 %v329
          %392 = vmatprep.subr.bf16.mxu0 0
          %393 = vmatpush2.bf16.msra.mxu0 %v328
          %394 = vmatprep.subr.bf16.mxu0 0
          %395 = vmatpush2.bf16.msra.mxu0 %v327
          %396 = vmatprep.subr.bf16.mxu0 0
          %397 = vmatpush2.bf16.msra.mxu0 %v326
          %398 = vmatprep.mubr.bf16.mxu0 %v217
          %399 = vmatmul.mubr.bf16.gmra.mxu0 %v216
          %v400 = vpop.f32.mrf.mxu0
          %v401 = vadd.f32 0.0, %v400
          %v402 = vpop.f32.mrf.mxu0
          %v403 = vpop.f32.mrf.mxu0
          %v404 = vpop.f32.mrf.mxu0
          %405 = vdwg.mxu0
          %406 = vmatprep.subr.bf16.mxu0 0
          %407 = vmatpush1.bf16.msra.mxu0 %v341
          %408 = vmatprep.subr.bf16.mxu0 0
          %409 = vmatpush1.bf16.msra.mxu0 %v340
          %410 = vmatprep.subr.bf16.mxu0 0
          %411 = vmatpush1.bf16.msra.mxu0 %v339
          %412 = vmatprep.subr.bf16.mxu0 0
          %413 = vmatpush1.bf16.msra.mxu0 %v338
          %414 = vmatprep.subr.bf16.mxu0 0
          %415 = vmatpush1.bf16.msra.mxu0 %v337
          %416 = vmatprep.subr.bf16.mxu0 0
          %417 = vmatpush1.bf16.msra.mxu0 %v336
          %418 = vmatprep.subr.bf16.mxu0 0
          %419 = vmatpush1.bf16.msra.mxu0 %v335
          %420 = vmatprep.subr.bf16.mxu0 0
          %421 = vmatpush1.bf16.msra.mxu0 %v334
          %422 = vmatprep.subr.bf16.mxu0 0
          %423 = vmatpush2.bf16.msra.mxu0 0
          %424 = vmatprep.subr.bf16.mxu0 0
          %425 = vmatpush2.bf16.msra.mxu0 0
          %426 = vmatprep.subr.bf16.mxu0 0
          %427 = vmatpush2.bf16.msra.mxu0 0
          %428 = vmatprep.subr.bf16.mxu0 0
          %429 = vmatpush2.bf16.msra.mxu0 0
          %430 = vmatprep.subr.bf16.mxu0 0
          %431 = vmatpush2.bf16.msra.mxu0 0
          %432 = vmatprep.subr.bf16.mxu0 0
          %433 = vmatpush2.bf16.msra.mxu0 0
          %434 = vmatprep.subr.bf16.mxu0 0
          %435 = vmatpush2.bf16.msra.mxu0 0
          %436 = vmatprep.subr.bf16.mxu0 0
          %437 = vmatpush2.bf16.msra.mxu0 0
          %438 = vmatprep.mubr.bf16.mxu0 0
          %439 = vmatmul.mubr.bf16.gmra.mxu0 %v218
          %v440 = vpop.f32.mrf.mxu0
          %v441 = vadd.f32 %v401, %v440
          %v442 = vpop.f32.mrf.mxu0
          %v443 = vpop.f32.mrf.mxu0
          %v444 = vpop.f32.mrf.mxu0
          %445 = vdwg.mxu0
          %v446 = vpack.c.bf16 %v441, %v441
          %vm447 = vcmask 781312
          %448 = vst.msk [vmem:[#allocation2] sm:$0xf] %vm447, %v446
        $region32: #{tpu_custom_call.1} parent=27 // pred_fallthru
          _
        %s449 = smul.u32 %s21, 8
        %s450 = sshra.s32 %s449, 3
        %s451 = sand.u32 %s449, 7
        %s452 = smul.addr %s450, 4
        %s453 = scalar_lea.vmem [#allocation2], %s452
        %v454 = vld [vmem:[%s453] sm:$0xf]
        %v455 = vld [vmem:[#allocation2] sm:$0xf]
        %v457 = vunpack.c.l.b16 %v455
        %v458 = vpack.c.b16 %v457, %v457
        %459 = vrot.lane.b32.xlu0 %v458, 96
        %v460 = vpop.permute.xlu0 %459
        %vm461 = vcmask 261120
        %v463 = vsel %vm461, %v454, 0
        %v466 = vsel %vm461, %v460, 0
        %468 = vmatprep.subr.bf16.mxu0 0
        %469 = vmatpush1.bf16.xpose.msra.mxu0 0
        %470 = vmatprep.subr.bf16.mxu0 0
        %471 = vmatpush1.bf16.xpose.msra.mxu0 0
        %472 = vmatprep.subr.bf16.mxu0 0
        %473 = vmatpush1.bf16.xpose.msra.mxu0 0
        %474 = vmatprep.subr.bf16.mxu0 0
        %475 = vmatpush1.bf16.xpose.msra.mxu0 0
        %476 = vmatprep.subr.bf16.mxu0 0
        %477 = vmatpush1.bf16.xpose.msra.mxu0 0
        %478 = vmatprep.subr.bf16.mxu0 0
        %479 = vmatpush1.bf16.xpose.msra.mxu0 0
        %480 = vmatprep.subr.bf16.mxu0 0
        %481 = vmatpush1.bf16.xpose.msra.mxu0 0
        %482 = vmatprep.subr.bf16.mxu0 0
        %483 = vmatpush1.bf16.xpose.msra.mxu0 %v466
        %484 = vmatprep.subr.bf16.mxu0 0
        %485 = vmatpush2.bf16.xpose.msra.mxu0 0
        %486 = vmatprep.subr.bf16.mxu0 0
        %487 = vmatpush2.bf16.xpose.msra.mxu0 0
        %488 = vmatprep.subr.bf16.mxu0 0
        %489 = vmatpush2.bf16.xpose.msra.mxu0 0
        %490 = vmatprep.subr.bf16.mxu0 0
        %491 = vmatpush2.bf16.xpose.msra.mxu0 0
        %492 = vmatprep.subr.bf16.mxu0 0
        %493 = vmatpush2.bf16.xpose.msra.mxu0 0
        %494 = vmatprep.subr.bf16.mxu0 0
        %495 = vmatpush2.bf16.xpose.msra.mxu0 0
        %496 = vmatprep.subr.bf16.mxu0 0
        %497 = vmatpush2.bf16.xpose.msra.mxu0 0
        %498 = vmatprep.subr.bf16.mxu0 0
        %499 = vmatpush2.bf16.xpose.msra.mxu0 0
        %500 = vmatprep.mubr.bf16.mxu0 0
        %501 = vmatmul.mubr.bf16.gmra.mxu0 %v463
        %v502 = vpop.f32.mrf.mxu0
        %v503 = vadd.f32 0.0, %v502
        %v504 = vpop.f32.mrf.mxu0
        %v505 = vpop.f32.mrf.mxu0
        %v506 = vpop.f32.mrf.mxu0
        %507 = vdwg.mxu0
        %v508 = vlaneseq
        %v509 = vshrl.u32 %v508, 7
        %v510 = vstv %s449
        %v511 = vadd.s32 %v509, %v510
        %v512 = vlaneseq
        %v513 = vand.u32 %v512, 127
        %vm514 = vcmp.le.s32.totalorder %v513, %v511
        %v515 = vsel %vm514, %v503, -inf
        %vm516 = vcmask 64512
        %v517 = vsel %vm516, %v515, -inf
        %518 = vmax.xlane.f32.xlu0 %v517
        %v519 = vpop.xlane.xlu0 %518
        %v520 = vsub.f32 %v515, %v519
        %v521 = vmul.f32 %v520, 1.442695
        %v522 = vpow.pop %v521
        %v523 = vsel %vm516, %v522, 0.0
        %524 = vadd.xlane.f32.xlu0 %v523
        %v525 = vpop.xlane.xlu0 %524
        %v526 = vrcp.pop %v525
        %v527 = vmul.f32 %v522, %v526
        %v528 = vpack.c.bf16 %v527, %v527
        %529 = vrot.lane.b32.xlu0 %v458, 64
        %v530 = vpop.permute.xlu0 %529
        %v532 = vsel %vm516, %v528, 0
        %vm534 = vcmask 1043456
        %v536 = vsel %vm534, %v530, 0
        %538 = vmatprep.subr.bf16.mxu0 0
        %539 = vmatpush1.bf16.msra.mxu0 0
        %540 = vmatprep.subr.bf16.mxu0 0
        %541 = vmatpush1.bf16.msra.mxu0 0
        %542 = vmatprep.subr.bf16.mxu0 0
        %543 = vmatpush1.bf16.msra.mxu0 0
        %544 = vmatprep.subr.bf16.mxu0 0
        %545 = vmatpush1.bf16.msra.mxu0 0
        %546 = vmatprep.subr.bf16.mxu0 0
        %547 = vmatpush1.bf16.msra.mxu0 0
        %548 = vmatprep.subr.bf16.mxu0 0
        %549 = vmatpush1.bf16.msra.mxu0 0
        %550 = vmatprep.subr.bf16.mxu0 0
        %551 = vmatpush1.bf16.msra.mxu0 0
        %552 = vmatprep.subr.bf16.mxu0 0
        %553 = vmatpush1.bf16.msra.mxu0 %v536
        %554 = vmatprep.subr.bf16.mxu0 0
        %555 = vmatpush2.bf16.msra.mxu0 0
        %556 = vmatprep.subr.bf16.mxu0 0
        %557 = vmatpush2.bf16.msra.mxu0 0
        %558 = vmatprep.subr.bf16.mxu0 0
        %559 = vmatpush2.bf16.msra.mxu0 0
        %560 = vmatprep.subr.bf16.mxu0 0
        %561 = vmatpush2.bf16.msra.mxu0 0
        %562 = vmatprep.subr.bf16.mxu0 0
        %563 = vmatpush2.bf16.msra.mxu0 0
        %564 = vmatprep.subr.bf16.mxu0 0
        %565 = vmatpush2.bf16.msra.mxu0 0
        %566 = vmatprep.subr.bf16.mxu0 0
        %567 = vmatpush2.bf16.msra.mxu0 0
        %568 = vmatprep.subr.bf16.mxu0 0
        %569 = vmatpush2.bf16.msra.mxu0 0
        %570 = vmatprep.mubr.bf16.mxu0 0
        %571 = vmatmul.mubr.bf16.gmra.mxu0 %v532
        %v572 = vpop.f32.mrf.mxu0
        %v573 = vadd.f32 0.0, %v572
        %v574 = vpop.f32.mrf.mxu0
        %v575 = vpop.f32.mrf.mxu0
        %v576 = vpop.f32.mrf.mxu0
        %577 = vdwg.mxu0
        %578 = vst.msk [vmem:[%s150] sm:$0xff] %vm461, %v573
        %s579 = sand.u32 %s85, 1
        %s580 = scalar_lea.sflag [#allocation4], %s579
        %s581 = sand.u32 %s85, 1
        %s582 = smul.addr %s581, 8
        %s583 = scalar_lea.vmem [#allocation3], %s582
        // Predicated region
        $region33: #{tpu_custom_call.1} parent=27 // pred_check
          %p584 = pneg %p95
        $region34: #{tpu_custom_call.1} parent=27 // pred_check_branch
          %586 = sbr.rel (%p584) target = $region36
        $region35: #{tpu_custom_call.1} parent=27 // pred_region
          %s588 = ssub.s32 128, 128
          %589 = vsyncadd %s580, %s588
          %s590 = sadd.s32 %s21, %s20
          %s591 = smul.addr %s590, 128
          %s592 = scalar_lea.hbm %s2, %s591
          %s594 = sshll.u32 %s583, 4
          %s595 = int_to_ptr.vmem [resolvable:$true] %s594
          %597 = dma.vmem_to_hbm [thread:$0]  %s595, 128, %s592, %s580
        $region36: #{tpu_custom_call.1} parent=27 // pred_fallthru
          _
      $region28: #{tpu_custom_call.1} parent=5 // pred_fallthru
        _
      %p598 = scmp.le.s32.totalorder 2, %s11
      // Predicated region
      $region37: #{tpu_custom_call.1} parent=5 // pred_check
        %p599 = pneg %p598
      $region38: #{tpu_custom_call.1} parent=5 // pred_check_branch
        %601 = sbr.rel (%p599) target = $region40
      $region39: #{tpu_custom_call.1} parent=5 // pred_region
        %s602 = ssub.s32 %s11, 2
        // Predicated region
        $region41: #{tpu_custom_call.1} parent=39 // pred_check
          %p603 = pneg %p101
        $region42: #{tpu_custom_call.1} parent=39 // pred_check_branch
          %605 = sbr.rel (%p603) target = $region44
        $region43: #{tpu_custom_call.1} parent=39 // pred_region
          %s606 = sand.u32 %s86, 1
          %s607 = scalar_lea.sflag [#allocation4], %s606
          %s608 = sand.u32 %s86, 1
          %s609 = smul.addr %s608, 8
          %s610 = scalar_lea.vmem [#allocation3], %s609
          %611 = dma.done %s607, 128
        $region44: #{tpu_custom_call.1} parent=39 // pred_fallthru
          _
      $region40: #{tpu_custom_call.1} parent=5 // pred_fallthru
        _
    $region6: #{tpu_custom_call.1} parent=1 // loop_footer
      %s15 = sadd.s32 1, %s11
    $region7: #{tpu_custom_call.1} parent=1 // loop_footer_branch
      %10 = sbr.rel target = $region3
    $region8: #{tpu_custom_call.1} parent=1 // loop_exit
      _
    %612 = vsyncpa [#allocation4], 1
    %s613 = scalar_lea.sflag [#allocation4], 1
    %614 = vsyncpa %s613, 1

</llo_original>
